<compile_context>
chip_gen: v6e
topology: v6e:2x2x1
jax: 0.10.0
libtpu: 0.0.40
codegen_flags: <defaults>
</compile_context>

<pallas_src>
import jax
import jax.numpy as jnp
from jax.experimental import pallas as pl
from jax.experimental.pallas import tpu as pltpu


def _h_sigmoid_kernel(x_ref, o_ref):
    x = x_ref[...]
    # ReLU6(x + 3) / 6  ==  clamp(x + 3, 0, 6) / 6
    y = jnp.minimum(jnp.maximum(x + 3.0, 0.0), 6.0) / 6.0
    o_ref[...] = y.astype(o_ref.dtype)


_LANE_CANDIDATES = (2048, 1024, 512, 256, 128)


def _target_block_bytes() -> int:
    """Generation-aware block size for an HBM-bandwidth-bound stream."""
    kind = ""
    try:
        kind = jax.devices()[0].device_kind.lower()
    except Exception:
        pass
    if "v5" in kind:
        # v5e: 16 MiB scoped-VMEM default; 2 in + 2 out buffers -> stay <= ~12 MiB.
        return 3 << 20
    if "v7" in kind or "7x" in kind:
        # v7x: 3.2 TB/s HBM -> bigger blocks needed to hide ~0.35us/step overhead.
        return 6 << 20
    # v6e / unknown: 4 buffers * 4 MiB = 16 MiB, well under the 32 MiB scoped default.
    return 4 << 20


def h_sigmoid(x, *, donate: bool = False):
    """Elementwise hard-sigmoid matching torch: relu6(x + 3) / 6. Any shape."""
    orig_shape = x.shape
    orig_dtype = x.dtype
    total = int(x.size)
    if total == 0:
        return x

    itemsize = jnp.dtype(orig_dtype).itemsize
    sub = max(8, 32 // itemsize)  # packed sublane count: 8 f32, 16 bf16, 32 int8

    # ---- lane-dense 2D view -------------------------------------------------
    lane = next((l for l in _LANE_CANDIDATES if total % l == 0), None)
    padded = lane is None
    if padded:
        # Rare fallback: x.size not a multiple of 128. Pad the flat view to one
        # lane (at most 127 extra elements), never to a tile_r*lane multiple.
        # TODO(synk): handle the tail with a tiny second call instead of padding.
        lane = 128
        pad = (-total) % lane
        flat = jnp.pad(x.reshape(-1), (0, pad))
        n_rows = (total + pad) // lane
        x2d = flat.reshape(n_rows, lane)
    else:
        n_rows = total // lane
        x2d = x.reshape(n_rows, lane)  # free metadata reshape, no HBM copy

    # ---- row tile: big enough to hide per-step overhead, VMEM-safe ----------
    if n_rows <= sub:
        tile_r = n_rows  # full-dim block (allowed even when < sublane pack)
    else:
        tile_r = max(sub, (_target_block_bytes() // (lane * itemsize)) // sub * sub)
        # Keep >= 2 grid steps so v7x megacore can split work across both TCs.
        half = -(-n_rows // 2)
        half = -(-half // sub) * sub
        tile_r = min(tile_r, half)

    grid = (pl.cdiv(n_rows, tile_r),)

    out = pl.pallas_call(
        _h_sigmoid_kernel,
        out_shape=jax.ShapeDtypeStruct(x2d.shape, orig_dtype),
        grid_spec=pl.GridSpec(
            grid=grid,
            in_specs=[pl.BlockSpec((tile_r, lane), lambda i: (i, 0))],
            out_specs=pl.BlockSpec((tile_r, lane), lambda i: (i, 0)),
        ),
        compiler_params=pltpu.CompilerParams(
            # Row tiles are independent -> shard across TensorCores (v7x).
            dimension_semantics=("parallel",),
        ),
        # Alias only when safe without a defensive copy: the padded flat array
        # is a kernel-local temp; otherwise require explicit donation.
        input_output_aliases=({0: 0} if (donate or padded) else {}),
        cost_estimate=pl.CostEstimate(
            flops=4 * n_rows * lane,
            transcendentals=0,
            bytes_accessed=2 * n_rows * lane * itemsize,
        ),
    )(x2d)

    if padded:
        out = out.reshape(-1)[:total]
    return out.reshape(orig_shape)


if __name__ == "__main__":
    key = jax.random.PRNGKey(0)
    # NCHW input, same convention as the PyTorch module.
    x = jax.random.normal(key, (2, 4, 16, 16), dtype=jnp.float32) * 4.0

    y = jax.jit(h_sigmoid)(x)
    y = jax.block_until_ready(y)

    # Reference check in plain JAX.
    ref = jnp.clip(x + 3.0, 0.0, 6.0) / 6.0
    assert y.shape == x.shape
    assert y.dtype == x.dtype
    assert float(jnp.max(jnp.abs(y - ref))) < 1e-6

    print("KERNEL_OK")
</pallas_src>

<mosaic_0001>
module attributes {stable_mosaic.version = 11 : i64} {
  func.func @_h_sigmoid_kernel(%arg0: i32, %arg1: memref<1x2048xf32, #tpu.memory_space<vmem>>, %arg2: memref<1x2048xf32, #tpu.memory_space<vmem>>) attributes {dimension_semantics = [#tpu.dimension_semantics<parallel>], iteration_bounds = array<i64: 1>, scalar_prefetch = 0 : i64, scratch_operands = 0 : i64, tpu.core_type = #tpu.core_type<tc>, window_params = [{transform_indices = @transform_0, window_bounds = array<i64: 1, 2048>}, {transform_indices = @transform_1, window_bounds = array<i64: 1, 2048>}]} {
    %c0 = arith.constant 0 : index
    %c0_0 = arith.constant 0 : index
    %0 = vector.load %arg1[%c0, %c0_0] : memref<1x2048xf32, #tpu.memory_space<vmem>>, vector<1x2048xf32>
    %cst = arith.constant 3.000000e+00 : f32
    %1 = vector.broadcast %cst : f32 to vector<1x2048xf32>
    %2 = arith.addf %0, %1 : vector<1x2048xf32>
    %cst_1 = arith.constant 0.000000e+00 : f32
    %3 = vector.broadcast %cst_1 : f32 to vector<1x2048xf32>
    %4 = arith.maximumf %2, %3 : vector<1x2048xf32>
    %cst_2 = arith.constant 6.000000e+00 : f32
    %5 = vector.broadcast %cst_2 : f32 to vector<1x2048xf32>
    %6 = arith.minimumf %4, %5 : vector<1x2048xf32>
    %cst_3 = arith.constant 6.000000e+00 : f32
    %7 = vector.broadcast %cst_3 : f32 to vector<1x2048xf32>
    %8 = arith.divf %6, %7 : vector<1x2048xf32>
    %c0_4 = arith.constant 0 : index
    %c0_5 = arith.constant 0 : index
    %9 = vector.load %arg2[%c0_4, %c0_5] : memref<1x2048xf32, #tpu.memory_space<vmem>>, vector<1x2048xf32>
    tpu.vector_store %arg2[%c0_4, %c0_5], %8 {strides = array<i32>} : memref<1x2048xf32, #tpu.memory_space<vmem>>, vector<1x2048xf32>,
    return
  }
  func.func @transform_0(%arg0: i32) -> (i32, i32) {
    %c0_i32 = arith.constant 0 : i32
    %c0_i32_0 = arith.constant 0 : i32
    return %arg0, %c0_i32 : i32, i32
  }
  func.func @transform_1(%arg0: i32) -> (i32, i32) {
    %c0_i32 = arith.constant 0 : i32
    %c0_i32_0 = arith.constant 0 : i32
    return %arg0, %c0_i32 : i32, i32
  }
}

</mosaic_0001>

<llo_original>
// kernel: h_sigmoid.1
$region0: #{h_sigmoid.1}
  #allocation0 [shape = 'u32[]', space=smem, size = 0x4, offset = 0x4, fixed_abs, tag = 'smem constant byte address 0x4 - core index']
  #allocation1 [shape = 'u32[144,128]{1,0:T(1,128)}', space=vmem, size = 0x12000, scoped, tag = 'internal scratch']
  %s0 = inlined_call_operand.vmem [shape: f32[1,2048], index: 0, kind: input, shape index: {}]
  %s1 = inlined_call_operand.vmem [shape: f32[1,2048], index: 1, kind: output, shape index: {}]
  %s2 = sld [smem:[#allocation0]]
  $region14: #{h_sigmoid.1} parent=0
    _
  %s4 = ssub.s32 1, %s2
  %s5 = scalar_select 0, %s4, %s2
  // Predicated region
  $region2: #{h_sigmoid.1} parent=0 // pred_check
    _
  $region3: #{h_sigmoid.1} parent=0 // pred_check_branch
    %7 = sbr.rel (0) target = $region5
  $region4: #{h_sigmoid.1} parent=0 // pred_region
    _
  $region5: #{h_sigmoid.1} parent=0 // pred_fallthru
    _
  %v8 = vld [vmem:[%s0] sm:$0xff]
  %v9 = vld [vmem:[%s0 + $0x8] sm:$0xff]
  %v10 = vadd.f32 %v8, 3.0
  %v11 = vadd.f32 %v9, 3.0
  %v12 = vmax.f32 %v10, 0.0
  %v13 = vmax.f32 %v11, 0.0
  %v14 = vmin.f32 %v12, 6.0
  %v15 = vmin.f32 %v13, 6.0
  %v16 = vrcp.pop 6.0
  %v17 = vmul.f32 %v14, %v16
  %v18 = vmul.f32 %v15, %v16
  %19 = vst [vmem:[%s1] sm:$0xff] %v17
  %20 = vst [vmem:[%s1 + $0x8] sm:$0xff] %v18
  // Predicated region
  $region6: #{h_sigmoid.1} parent=0 // pred_check
    _
  $region7: #{h_sigmoid.1} parent=0 // pred_check_branch
    %22 = sbr.rel (0) target = $region9
  $region8: #{h_sigmoid.1} parent=0 // pred_region
    _
  $region9: #{h_sigmoid.1} parent=0 // pred_fallthru
    _
  // Predicated region
  $region10: #{h_sigmoid.1} parent=0 // pred_check
    _
  $region11: #{h_sigmoid.1} parent=0 // pred_check_branch
    %24 = sbr.rel (0) target = $region13
  $region12: #{h_sigmoid.1} parent=0 // pred_region
    _
  $region13: #{h_sigmoid.1} parent=0 // pred_fallthru
    _

</llo_original>
